<compile_context>
chip_gen: v7x
topology: tpu7x:2x2x1
jax: 0.10.0
libtpu: 0.0.40
codegen_flags: <defaults>
</compile_context>

<pallas_src>
import math

import jax
import jax.numpy as jnp
from jax import lax
from jax.experimental import pallas as pl
from jax.experimental.pallas import tpu as pltpu


LANE = 128                            # pad d_model up to a multiple of this
SUBLANE = 8                           # sublane granularity for the position axis
MAX_TILE = 2048                       # max position rows per grid step
TARGET_BLOCK_BYTES = 2 * 1024 * 1024  # ~2 MiB output block (4 MiB double-buffered)


def _round_up(x, m):
    return ((x + m - 1) // m) * m


def _pick_tile(n_rows, d_pad):
    """Position tile: big enough to amortize per-grid-step overhead (~2 MiB
    output block), small enough to keep >= 2 grid steps (v7x dual-TC sharding)
    when there is enough work."""
    by_bytes = TARGET_BLOCK_BYTES // (d_pad * 4)
    tile = min(MAX_TILE, max(SUBLANE, (by_bytes // SUBLANE) * SUBLANE))
    tile = min(tile, _round_up(max(n_rows, 1), SUBLANE))
    if n_rows >= 2 * SUBLANE:
        # cap so the grid has at least 2 steps
        half = _round_up(-(-n_rows // 2), SUBLANE)
        tile = min(tile, half)
    return int(tile)


# ---------------------------------------------------------------------------
# Kernels
# ---------------------------------------------------------------------------

def _pe_range_kernel(start_ref, tab_ref, out_ref):
    """Contiguous positions: rows [start + i*tile, start + (i+1)*tile)."""
    tile = out_ref.shape[0]
    base = start_ref[0] + pl.program_id(0) * tile
    pos = (base + lax.broadcasted_iota(jnp.int32, (tile, 1), 0)).astype(jnp.float32)
    inv_freq = tab_ref[0:1, :]   # (1, d_pad) resident row
    phase = tab_ref[1:2, :]      # (1, d_pad) resident row
    # pe[p, 2i] = sin(p*f_i);  pe[p, 2i+1] = cos(p*f_i) = sin(p*f_i + pi/2)
    out_ref[...] = jnp.sin(pos * inv_freq + phase)


def _pe_gather_kernel(pos_ref, tab_ref, out_ref):
    """Arbitrary positions: pos_ref holds one absolute position per row."""
    inv_freq = tab_ref[0:1, :]
    phase = tab_ref[1:2, :]
    out_ref[...] = jnp.sin(pos_ref[...] * inv_freq + phase)


# ---------------------------------------------------------------------------
# pallas_call wrappers
# ---------------------------------------------------------------------------

def _pe_rows_range(start, length, tab, d_model):
    """(length, d_model) f32 PE rows for positions start .. start+length-1."""
    d_pad = tab.shape[-1]
    tile = _pick_tile(length, d_pad)
    grid = pl.cdiv(length, tile)
    start_arr = jnp.asarray([start], dtype=jnp.int32)
    out = pl.pallas_call(
        _pe_range_kernel,
        out_shape=jax.ShapeDtypeStruct((length, d_pad), jnp.float32),
        grid_spec=pltpu.PrefetchScalarGridSpec(
            num_scalar_prefetch=1,
            grid=(grid,),
            in_specs=[pl.BlockSpec((2, d_pad), lambda i, s: (0, 0))],   # fused inv_freq/phase
            out_specs=pl.BlockSpec((tile, d_pad), lambda i, s: (i, 0)),
        ),
        compiler_params=pltpu.CompilerParams(dimension_semantics=("parallel",)),
    )(start_arr, tab)
    return out if d_pad == d_model else out[:, :d_model]


def _pe_rows_gather(positions, tab, d_model):
    """(N, d_model) f32 PE rows for arbitrary integer positions."""
    n = positions.shape[0]
    d_pad = tab.shape[-1]
    tile = _pick_tile(n, d_pad)
    grid = pl.cdiv(n, tile)
    pos = positions.astype(jnp.float32)[:, None]          # (n, 1), no row padding
    out = pl.pallas_call(
        _pe_gather_kernel,
        out_shape=jax.ShapeDtypeStruct((n, d_pad), jnp.float32),
        grid_spec=pltpu.PrefetchScalarGridSpec(
            num_scalar_prefetch=0,
            grid=(grid,),
            in_specs=[pl.BlockSpec((tile, 1), lambda i: (i, 0)),        # positions
                      pl.BlockSpec((2, d_pad), lambda i: (0, 0))],      # fused inv_freq/phase
            out_specs=pl.BlockSpec((tile, d_pad), lambda i: (i, 0)),
        ),
        compiler_params=pltpu.CompilerParams(dimension_semantics=("parallel",)),
    )(pos, tab)
    return out if d_pad == d_model else out[:, :d_model]


# ---------------------------------------------------------------------------
# Module
# ---------------------------------------------------------------------------

class PositionalEmbedding:
    """JAX/Pallas equivalent of the torch PositionalEmbedding module."""

    def __init__(self, d_model, max_len=5000):
        assert max_len < (1 << 24), "positions must be exactly representable in f32"
        self.d_model = d_model
        self.max_len = max_len
        d_pad = _round_up(d_model, LANE)
        j = jnp.arange(d_pad)
        # inv_freq[2i] = inv_freq[2i+1] = exp(-2i * ln(10000) / d_model)
        pair = (2 * (j // 2)).astype(jnp.float32)
        inv_freq = jnp.exp(pair * (-math.log(10000.0) / d_model))
        inv_freq = jnp.where(j < d_model, inv_freq, 0.0).astype(jnp.float32)
        # phase = 0 on even lanes (sin), pi/2 on odd lanes (cos via sin(x+pi/2))
        phase = jnp.where((j % 2) == 1, math.pi / 2.0, 0.0)
        phase = jnp.where(j < d_model, phase, 0.0).astype(jnp.float32)
        # single (2, d_pad) resident kernel input: row 0 = inv_freq, row 1 = phase
        self._tab = jnp.stack([inv_freq, phase], axis=0)

    def __call__(self, start=0, end=None, ids=None):
        if ids is not None:
            pos = jnp.asarray(ids, dtype=jnp.int32)
            pos = jnp.where(pos < 0, pos + self.max_len, pos)  # torch-style negative ids
            if pos.shape[0] == 0:
                return jnp.zeros((1, 0, self.d_model), jnp.float32)
            rows = _pe_rows_gather(pos, self._tab, self.d_model)
        else:
            s, e, _ = slice(start, end).indices(self.max_len)   # torch slice semantics
            length = max(0, e - s)
            if length == 0:
                return jnp.zeros((1, 0, self.d_model), jnp.float32)
            rows = _pe_rows_range(s, length, self._tab, self.d_model)
        return rows[None]   # (1, L, d_model) == pe[:, start:end] / pe[:, ids]


# ---------------------------------------------------------------------------
# Reference + test
# ---------------------------------------------------------------------------

def _reference_pe_table(d_model, max_len):
    """Pure-JAX reference mirroring the torch __init__ buffer construction."""
    pe = jnp.zeros((max_len, d_model), dtype=jnp.float32)
    position = jnp.arange(0, max_len, dtype=jnp.float32)[:, None]
    div_term = jnp.exp(
        jnp.arange(0, d_model, 2, dtype=jnp.float32) * -(math.log(10000.0) / d_model))
    pe = pe.at[:, 0::2].set(jnp.sin(position * div_term))
    pe = pe.at[:, 1::2].set(jnp.cos(position * div_term))
    return pe[None]  # (1, max_len, d_model)


if __name__ == "__main__":
    d_model = 32
    max_len = 64

    pe_mod = PositionalEmbedding(d_model, max_len=max_len)
    pe_ref = _reference_pe_table(d_model, max_len)

    # deterministic example "inputs" (forward args) built with PRNGKey(0)
    key = jax.random.PRNGKey(0)
    ids = jax.random.randint(key, (8,), 0, max_len)  # seq=8 gathered positions

    # Tolerance note: odd (cos) lanes use the identity cos(x) = sin(x + pi/2);
    # the extra f32 rounding of (x + pi/2) bounds the deviation from the torch
    # formulation by < 4e-6 at these position magnitudes, hence atol=2e-5.
    atol, rtol = 2e-5, 1e-5

    # mode 1: contiguous slice pe[:, start:end]
    start, end = 3, 19
    out_slice = jax.block_until_ready(pe_mod(start=start, end=end))
    ref_slice = pe_ref[:, start:end]
    assert out_slice.shape == (1, end - start, d_model)
    assert jnp.allclose(out_slice, ref_slice, atol=atol, rtol=rtol)

    # mode 2: gather pe[:, ids]
    out_ids = jax.block_until_ready(pe_mod(ids=ids))
    ref_ids = pe_ref[:, ids]
    assert out_ids.shape == (1, ids.shape[0], d_model)
    assert jnp.allclose(out_ids, ref_ids, atol=atol, rtol=rtol)

    print("KERNEL_OK")
</pallas_src>

<mosaic_0001>
module attributes {stable_mosaic.version = 11 : i64} {
  func.func @_pe_range_kernel(%arg0: i32, %arg1: memref<1xi32, #tpu.memory_space<smem>>, %arg2: memref<2x128xf32, #tpu.memory_space<vmem>>, %arg3: memref<8x128xf32, #tpu.memory_space<vmem>>) attributes {dimension_semantics = [#tpu.dimension_semantics<parallel>], iteration_bounds = array<i64: 2>, scalar_prefetch = 1 : i64, scratch_operands = 0 : i64, tpu.core_type = #tpu.core_type<tc>, window_params = [{pipeline_mode = #tpu.pipeline_mode<synchronous>, transform_indices = @transform_0, window_bounds = array<i64: 2, 128>}, {transform_indices = @transform_1, window_bounds = array<i64: 8, 128>}]} {
    %c0 = arith.constant 0 : index
    %0 = memref.load %arg1[%c0] : memref<1xi32, #tpu.memory_space<smem>>
    %c8_i32 = arith.constant 8 : i32
    %1 = arith.muli %arg0, %c8_i32 : i32
    %2 = arith.addi %0, %1 : i32
    %3 = tpu.iota {dimensions = array<i32: 0>} : vector<8x1xi32>
    %4 = vector.broadcast %2 : i32 to vector<8x1xi32>
    %5 = arith.addi %4, %3 : vector<8x1xi32>
    %6 = arith.sitofp %5 : vector<8x1xi32> to vector<8x1xf32>
    %c0_0 = arith.constant 0 : index
    %c0_1 = arith.constant 0 : index
    %7 = vector.load %arg2[%c0_0, %c0_1] : memref<2x128xf32, #tpu.memory_space<vmem>>, vector<1x128xf32>
    %c1 = arith.constant 1 : index
    %c0_2 = arith.constant 0 : index
    %8 = vector.load %arg2[%c1, %c0_2] : memref<2x128xf32, #tpu.memory_space<vmem>>, vector<1x128xf32>
    %9 = vector.broadcast %6 : vector<8x1xf32> to vector<8x128xf32>
    %10 = vector.broadcast %7 : vector<1x128xf32> to vector<8x128xf32>
    %11 = arith.mulf %9, %10 : vector<8x128xf32>
    %12 = vector.broadcast %8 : vector<1x128xf32> to vector<8x128xf32>
    %13 = arith.addf %11, %12 : vector<8x128xf32>
    %14 = math.sin %13 : vector<8x128xf32>
    %c0_3 = arith.constant 0 : index
    %c0_4 = arith.constant 0 : index
    %15 = vector.load %arg3[%c0_3, %c0_4] : memref<8x128xf32, #tpu.memory_space<vmem>>, vector<8x128xf32>
    tpu.vector_store %arg3[%c0_3, %c0_4], %14 {strides = array<i32>} : memref<8x128xf32, #tpu.memory_space<vmem>>, vector<8x128xf32>,
    return
  }
  func.func @transform_0(%arg0: i32, %arg1: memref<1xi32, #tpu.memory_space<smem>>) -> (i32, i32) {
    %c0_i32 = arith.constant 0 : i32
    %c0_i32_0 = arith.constant 0 : i32
    %c0_i32_1 = arith.constant 0 : i32
    return %c0_i32, %c0_i32_0 : i32, i32
  }
  func.func @transform_1(%arg0: i32, %arg1: memref<1xi32, #tpu.memory_space<smem>>) -> (i32, i32) {
    %c0_i32 = arith.constant 0 : i32
    %c0_i32_0 = arith.constant 0 : i32
    return %arg0, %c0_i32 : i32, i32
  }
}

</mosaic_0001>

<llo_original>
// kernel: tpu_custom_call.1
$region0: #{tpu_custom_call.1}
  #allocation0 [shape = 'u32[]', space=smem, size = 0x4, offset = 0x4, fixed_abs, tag = 'smem constant byte address 0x4 - core index']
  #allocation1 [shape = 'u32[144,128]{1,0:T(1,128)}', space=vmem, size = 0x12000, scoped, tag = 'internal scratch']
  #allocation2 [shape = 's32[1]{0}', space=sflag, size = 0x4, scoped, tag = 'scoped memory for tpu_custom_call.1']
  #allocation3 [shape = 's32[1]{0:T(128)S(6)}', space=smem, size = 0x200, scoped, tag = 'prefetched SMEM operand 0']
  %s0 = inlined_call_operand.<no memory space> [shape: s32[1], index: 0, kind: input, shape index: {}]
  %s1 = inlined_call_operand.vmem [shape: f32[2,128], index: 1, kind: input, shape index: {}]
  %s2 = inlined_call_operand.hbm [shape: f32[16,128], index: 2, kind: output, shape index: {}]
  %s3 = sld [smem:[#allocation0]]
  $region37: #{tpu_custom_call.1} parent=0
    _
  %s5 = ssub.s32 1, %s3
  %s6 = scalar_select 0, %s5, %s3
  %7 = sst [smem:[#allocation3]] %s0
  $region1: #{tpu_custom_call.1} parent=0
    #allocation4 [shape = 'u8[8192]{0}', space=vmem, size = 0x2000, scoped, tag = 'output window, operand 0']
    #allocation5 [shape = 's32[2]{0}', space=sflag, size = 0x8, scoped, tag = 'scoped memory for tpu_custom_call.1']
    %8 = vsyncpa [#allocation5], 0
    %s9 = scalar_lea.sflag [#allocation5], 1
    %10 = vsyncpa %s9, 0
    loop: start=0, step=1, limit=4
    $region2: #{tpu_custom_call.1} parent=1 // loop_pre_header
      _
    $region3: #{tpu_custom_call.1} parent=1 // loop_header
      %s12 = sphi 0, %s16
      %p13 = scmp.ge.s32.totalorder %s12, 4
      %s20 = sphi 0, %s20
      %s22 = sphi 0, %s20
      %s23 = sphi 0, %s22
      %s37 = sphi 0, %s23
      %s43 = sphi 0, %s45
      %s46 = sphi 0, %s43
      %s47 = sphi 0, %s46
      %s63 = sphi 0, %s47
    $region4: #{tpu_custom_call.1} parent=1 // loop_header_branch
      %15 = sbr.rel (%p13) target = $region8
    $region5: #{tpu_custom_call.1} parent=1 // loop_body
      %s17 = ssub.s32 %s12, 1
      %s18 = ssub.s32 %s12, 2
      %s19 = sadd.s32 %s12, 1
      %s21 = sadd.s32 %s20, 1
      %p24 = scmp.eq.s32.totalorder %s12, 1
      %p25 = scmp.ne.s32.totalorder %s20, %s22
      %p26 = scmp.eq.s32.totalorder %s12, 0
      %p27 = por %p25, %p26
      %p28 = scmp.ne.s32.totalorder %s20, %s22
      %p29 = scmp.eq.s32.totalorder %s17, 1
      %p30 = por %p28, %p29
      %p31 = scmp.ne.s32.totalorder %s22, %s23
      %p32 = scmp.eq.s32.totalorder %s17, 0
      %p33 = por %p31, %p32
      %p34 = scmp.ne.s32.totalorder %s22, %s23
      %p35 = scmp.eq.s32.totalorder %s18, 1
      %p36 = por %p34, %p35
      %p38 = scmp.ne.s32.totalorder %s23, %s37
      %p39 = scmp.eq.s32.totalorder %s18, 0
      %p40 = por %p38, %p39
      %s41 = ssub.s32 %s12, %s19
      %p42 = scmp.eq.s32.totalorder %s41, 0
      %s44 = sadd.s32 %s43, 1
      %s45 = scalar_select %p42, %s43, %s44
      %p48 = pneg %p42
      %p49 = scmp.eq.s32.totalorder %s12, 1
      %p50 = por %p48, %p49
      %p51 = scmp.ne.s32.totalorder %s43, %s46
      %p52 = scmp.eq.s32.totalorder %s12, 0
      %p53 = por %p51, %p52
      %p54 = scmp.ne.s32.totalorder %s43, %s46
      %p55 = scmp.eq.s32.totalorder %s17, 1
      %p56 = por %p54, %p55
      %p57 = scmp.ne.s32.totalorder %s46, %s47
      %p58 = scmp.eq.s32.totalorder %s17, 0
      %p59 = por %p57, %p58
      %p60 = scmp.ne.s32.totalorder %s46, %s47
      %p61 = scmp.eq.s32.totalorder %s18, 1
      %p62 = por %p60, %p61
      %p64 = scmp.ne.s32.totalorder %s47, %s63
      %p65 = scmp.eq.s32.totalorder %s18, 0
      %p66 = por %p64, %p65
      %p67 = scmp.le.s32.totalorder 1, %s12
      %p68 = scmp.lt.s32.totalorder %s12, 3
      %p69 = pnand %p67, %p68
      %p70 = pneg %p69
      // Predicated region
      $region9: #{tpu_custom_call.1} parent=5 // pred_check
        _
      $region10: #{tpu_custom_call.1} parent=5 // pred_check_branch
        %72 = sbr.rel (%p69) target = $region12
      $region11: #{tpu_custom_call.1} parent=5 // pred_region
        %s73 = ssub.s32 %s12, 1
        // Predicated region
        $region13: #{tpu_custom_call.1} parent=11 // pred_check
          %p74 = pneg %p33
        $region14: #{tpu_custom_call.1} parent=11 // pred_check_branch
          %76 = sbr.rel (%p74) target = $region16
        $region15: #{tpu_custom_call.1} parent=11 // pred_region
          _
        $region16: #{tpu_custom_call.1} parent=11 // pred_fallthru
          _
      $region12: #{tpu_custom_call.1} parent=5 // pred_fallthru
        _
      %p77 = scmp.lt.s32.totalorder %s12, 2
      // Predicated region
      $region17: #{tpu_custom_call.1} parent=5 // pred_check
        %p78 = pneg %p77
      $region18: #{tpu_custom_call.1} parent=5 // pred_check_branch
        %80 = sbr.rel (%p78) target = $region20
      $region19: #{tpu_custom_call.1} parent=5 // pred_region
        _
      $region20: #{tpu_custom_call.1} parent=5 // pred_fallthru
        _
      %p81 = scmp.le.s32.totalorder 1, %s12
      %p82 = scmp.lt.s32.totalorder %s12, 3
      %p83 = pnand %p81, %p82
      %p84 = pneg %p83
      // Predicated region
      $region21: #{tpu_custom_call.1} parent=5 // pred_check
        _
      $region22: #{tpu_custom_call.1} parent=5 // pred_check_branch
        %86 = sbr.rel (%p83) target = $region24
      $region23: #{tpu_custom_call.1} parent=5 // pred_region
        %s87 = ssub.s32 %s12, 1
        %p88 = pneg %p33
        %p89 = pneg %p30
        %p90 = pneg %p59
        %p91 = pneg %p56
        %s92 = sand.u32 %s46, 1
        %s93 = scalar_lea.sflag [#allocation5], %s92
        %s94 = sand.u32 %s46, 1
        %s95 = smul.addr %s94, 8
        %s96 = scalar_lea.vmem [#allocation4], %s95
        %s97 = sld [smem:[#allocation3]]
        %s98 = smul.u32 %s17, 8
        %s99 = sadd.s32 %s97, %s98
        %v100 = vlaneseq
        %v101 = vshrl.u32 %v100, 7
        %v102 = vstv %s99
        %v103 = vadd.s32 %v102, %v101
        %v104 = vcvt.s32.f32 %v103
        %v105 = vld [vmem:[%s1] sm:$0x1]
        %v106 = vld [vmem:[%s1 + $0x1] sm:$0x1]
        %v107 = vlaneseq
        %v108 = vshrl.u32 %v107, 7
        %v109 = vsub.s32 0, %v108
        %v110 = vrot.slane %v105, %v109
        %v111 = vmul.f32 %v104, %v110
        %v112 = vlaneseq
        %v113 = vshrl.u32 %v112, 7
        %v114 = vsub.s32 0, %v113
        %v115 = vrot.slane %v106, %v114
        %v116 = vadd.f32 %v111, %v115
        %v117 = vand.u32 2147483647, %v116
        %vm118 = vcmp.le.f32.partialorder %v117, 0.7853982
        %vm119 = vcmp.lt.s32.totalorder %v116, 0
        %v120 = vand.u32 %v116, 2139095040
        %v121 = vshrl.u32 %v120, 23
        %v122 = vsub.s32 %v121, 127
        %v123 = vand.u32 2147483647, %v116
        %v124 = vand.u32 %v123, 8388607
        %v125 = vor.u32 %v124, 8388608
        %v126 = vsub.s32 0, %v125
        %v127 = vadd.s32 %v122, 1
        %vm128 = vcmp.gt.s32.totalorder %v127, 0
        %v129 = vsel %vm128, %v127, 0
        %v130 = vshrl.u32 %v129, 5
        %v131 = vand.u32 %v129, 31
        %v132 = vsub.s32 32, %v131
        %v133 = vshrl.u32 683565275, %v132
        %v134 = vshll.u32 683565275, %v131
        %v135 = vshrl.u32 2475754826, %v132
        %v136 = vor.u32 %v134, %v135
        %v137 = vshll.u32 2475754826, %v131
        %v138 = vshrl.u32 2131351028, %v132
        %v139 = vor.u32 %v137, %v138
        %v140 = vshll.u32 2131351028, %v131
        %v141 = vshrl.u32 2102212464, %v132
        %v142 = vor.u32 %v140, %v141
        %v143 = vshll.u32 2102212464, %v131
        %v144 = vshrl.u32 920167782, %v132
        %v145 = vor.u32 %v143, %v144
        %v146 = vshll.u32 920167782, %v131
        %v147 = vshrl.u32 1326507024, %v132
        %v148 = vor.u32 %v146, %v147
        %vm149 = vcmp.lt.s32.totalorder %v130, 1
        %vm150 = vcmp.lt.s32.totalorder %v130, 2
        %vm151 = vcmp.lt.s32.totalorder %v130, 3
        %vm152 = vcmp.lt.s32.totalorder %v130, 4
        %v153 = vsel %vm149, %v133, %v136
        %v154 = vsel %vm152, %v142, 2102212464
        %v155 = vsel %vm151, %v139, %v154
        %v156 = vsel %vm150, %v153, %v155
        %v157 = vsel %vm149, %v136, %v139
        %v158 = vsel %vm152, %v145, 920167782
        %v159 = vsel %vm151, %v142, %v158
        %v160 = vsel %vm150, %v157, %v159
        %v161 = vsel %vm149, %v139, %v142
        %v162 = vsel %vm152, %v148, 1326507024
        %v163 = vsel %vm151, %v145, %v162
        %v164 = vsel %vm150, %v161, %v163
        %v165 = vshll.u32 %v125, 8
        %v166 = vmul.u32.u64.compose %v165, %v164
        %v167 = vextract.low.u32 %v166
        %v168 = vextract.high.u32 %v166
        %v169 = vmul.u32.u64.compose %v165, %v160
        %v170 = vextract.low.u32 %v169
        %v171 = vextract.high.u32 %v169
        %v172 = vmul.u32 %v165, %v156
        %v173 = vadd.s32 %v168, %v170
        %vm174 = vc.u32 %v168, %v170
        %v175 = vadd.s32 %v171, 1
        %v176 = vsel %vm174, %v175, %v171
        %v177 = vadd.s32 %v172, %v176
        %v178 = vadd.s32 %v177, 536870912
        %v179 = vshrl.u32 %v178, 30
        %v180 = vshll.u32 %v179, 30
        %v181 = vsub.s32 %v177, %v180
        %vm182 = vcmp.lt.s32.totalorder %v181, 0
        %v183 = vsub.s32 0, %v181
        %v184 = vsel %vm182, %v183, %v181
        %v185 = vclz %v184
        %v186 = vsub.s32 %v185, 2
        %vm187 = vcmp.gt.s32.totalorder 0, %v186
        %v188 = vsel %vm187, 0, %v186
        %v189 = vsub.s32 32, %v188
        %v190 = vshll.u32 %v181, %v188
        %v191 = vshrl.u32 %v173, %v189
        %v192 = vor.u32 %v190, %v191
        %v193 = vsub.s32 4294967266, %v188
        %v194 = vadd.s32 %v193, 127
        %v195 = vshll.u32 %v194, 23
        %v196 = vor.u32 4788187, %v195
        %v197 = vand.u32 2147483647, %v196
        %v199 = vcvt.s32.f32 %v192
        %v200 = vmul.f32 %v199, %v197
        %v201 = vxor.u32 %v200, 2147483648
        %v202 = vsel %vm119, %v201, %v200
        %v203 = vsub.s32 4, %v179
        %v204 = vsel %vm119, %v203, %v179
        %v205 = vsel %vm118, %v116, %v202
        %v206 = vsel %vm118, 0, %v204
        %v207 = vcosq.f32.pop %v205
        %v208 = vsinq.f32.pop %v205
        %vm209 = vweird.f32 %v116
        %v210 = vadd.s32 %v206, 3
        %v211 = vand.u32 %v210, 3
        %vm212 = vcmp.lt.s32.totalorder %v211, 2
        %vm213 = vcmp.eq.s32.totalorder %v211, 0
        %v214 = vxor.u32 %v208, 2147483648
        %v215 = vsel %vm213, %v207, %v214
        %vm216 = vcmp.eq.s32.totalorder %v211, 2
        %v217 = vxor.u32 %v207, 2147483648
        %v218 = vsel %vm216, %v217, %v208
        %v219 = vsel %vm212, %v215, %v218
        %v220 = vsel %vm209, nan, %v219
        %221 = vst [vmem:[%s96] sm:$0xff] %v220
        %s222 = sand.u32 %s46, 1
        %s223 = scalar_lea.sflag [#allocation5], %s222
        %s224 = sand.u32 %s46, 1
        %s225 = smul.addr %s224, 8
        %s226 = scalar_lea.vmem [#allocation4], %s225
        // Predicated region
        $region25: #{tpu_custom_call.1} parent=23 // pred_check
          %p227 = pneg %p56
        $region26: #{tpu_custom_call.1} parent=23 // pred_check_branch
          %229 = sbr.rel (%p227) target = $region28
        $region27: #{tpu_custom_call.1} parent=23 // pred_region
          %s231 = ssub.s32 128, 128
          %232 = vsyncadd %s223, %s231
          %s233 = smul.addr %s17, 128
          %s234 = scalar_lea.hbm %s2, %s233
          %s236 = sshll.u32 %s226, 4
          %s237 = int_to_ptr.vmem [resolvable:$true] %s236
          %239 = dma.vmem_to_hbm [thread:$0]  %s237, 128, %s234, %s223
        $region28: #{tpu_custom_call.1} parent=23 // pred_fallthru
          _
      $region24: #{tpu_custom_call.1} parent=5 // pred_fallthru
        _
      %p240 = scmp.le.s32.totalorder 2, %s12
      // Predicated region
      $region29: #{tpu_custom_call.1} parent=5 // pred_check
        %p241 = pneg %p240
      $region30: #{tpu_custom_call.1} parent=5 // pred_check_branch
        %243 = sbr.rel (%p241) target = $region32
      $region31: #{tpu_custom_call.1} parent=5 // pred_region
        %s244 = ssub.s32 %s12, 2
        // Predicated region
        $region33: #{tpu_custom_call.1} parent=31 // pred_check
          %p245 = pneg %p62
        $region34: #{tpu_custom_call.1} parent=31 // pred_check_branch
          %247 = sbr.rel (%p245) target = $region36
        $region35: #{tpu_custom_call.1} parent=31 // pred_region
          %s248 = sand.u32 %s47, 1
          %s249 = scalar_lea.sflag [#allocation5], %s248
          %s250 = sand.u32 %s47, 1
          %s251 = smul.addr %s250, 8
          %s252 = scalar_lea.vmem [#allocation4], %s251
          %253 = dma.done %s249, 128
        $region36: #{tpu_custom_call.1} parent=31 // pred_fallthru
          _
      $region32: #{tpu_custom_call.1} parent=5 // pred_fallthru
        _
    $region6: #{tpu_custom_call.1} parent=1 // loop_footer
      %s16 = sadd.s32 1, %s12
    $region7: #{tpu_custom_call.1} parent=1 // loop_footer_branch
      %11 = sbr.rel target = $region3
    $region8: #{tpu_custom_call.1} parent=1 // loop_exit
      _
    %254 = vsyncpa [#allocation5], 1
    %s255 = scalar_lea.sflag [#allocation5], 1
    %256 = vsyncpa %s255, 1

</llo_original>
